<compile_context>
chip_gen: v5e
topology: v5e:2x2
jax: 0.10.0
libtpu: 0.0.40
codegen_flags: <defaults>
</compile_context>

<pallas_src>
import jax
import jax.numpy as jnp
from jax import lax
from jax.experimental import pallas as pl
from jax.experimental.pallas import tpu as pltpu


def _round_up(v, m):
    return ((v + m - 1) // m) * m


def club_for_categorical_forward(x, labels, w1, b1, w2, b2, label_num,
                                 block_b=1024, matmul_dtype=jnp.bfloat16,
                                 core_splits=2, vmem_limit_bytes=None):
    """CLUB MI upper bound (positive - negative) for categorical labels.

    x: [B, D] float, labels: [B] int, w1: [D, H], b1: [H], w2: [H, L], b2: [L]
    (nn.Linear weights pre-transposed to [in, out]).  Returns a scalar f32.
    """
    B, D = x.shape
    H = w1.shape[1]
    L = w2.shape[1]
    if L != label_num:
        raise ValueError(f"label_num={label_num} != w2.shape[1]={L}")

    # ---------------- host glue (tiny) ----------------
    # Per-label counts of the *real* labels.  sum(counts) == B is what makes
    # the per-row log-sum-exp cancel between the positive and negative terms.
    labels_i32 = labels.astype(jnp.int32)
    counts = jnp.zeros((L,), jnp.float32).at[labels_i32].add(1.0).reshape(1, L)

    # Batch tiling: tb rows per grid step, `core_splits` independent partials.
    splits = max(1, int(core_splits))
    tb = _round_up(max(8, min(block_b, B)), 8)
    tb = min(tb, _round_up(pl.cdiv(B, splits), 8))
    inner = pl.cdiv(B, splits * tb)            # reduction steps per core-split
    b_pad = splits * inner * tb

    labels_2d = labels_i32.reshape(B, 1)
    if b_pad != B:
        x = jnp.pad(x, ((0, b_pad - B), (0, 0)))
        labels_2d = jnp.pad(labels_2d, ((0, b_pad - B), (0, 0)),
                            constant_values=-1)       # -1 => masked in-kernel

    # Weights are small & reused -> cast host-side; x is cast inside the kernel.
    w1_c = w1.astype(matmul_dtype)
    w2_c = w2.astype(matmul_dtype)
    b1_2d = b1.reshape(1, H).astype(jnp.float32)
    b2_2d = b2.reshape(1, L).astype(jnp.float32)

    batch_f = float(B)
    inv_bsq = 1.0 / (batch_f * batch_f)
    f32_path = jnp.dtype(matmul_dtype) == jnp.dtype(jnp.float32)
    dot_prec = lax.Precision.HIGHEST if f32_path else None

    def kernel(x_ref, lbl_ref, w1_ref, b1_ref, w2_ref, b2_ref, cnt_ref,
               out_ref, acc_ref):
        i = pl.program_id(1)

        @pl.when(i == 0)
        def _():
            acc_ref[...] = jnp.zeros_like(acc_ref)

        # variational_net: Linear -> ReLU -> Linear (f32 accumulation on MXU).
        xin = x_ref[...].astype(w1_ref.dtype)          # in-kernel bf16/f32 cast
        h = jnp.dot(xin, w1_ref[...], precision=dot_prec,
                    preferred_element_type=jnp.float32) + b1_ref[...]
        h = jnp.maximum(h, 0.0)
        logits = jnp.dot(h.astype(w2_ref.dtype), w2_ref[...], precision=dot_prec,
                         preferred_element_type=jnp.float32) + b2_ref[...]

        # Fused positive/negative weighted sum.  log_softmax cancels exactly:
        #   result = (1/B^2) * sum logits * weight,
        #   weight[i,l] = B*[labels[i]==l] - counts[l]   (0 for padded rows).
        lbl = lbl_ref[...]                                          # [tb, 1]
        col = lax.broadcasted_iota(jnp.int32, logits.shape, 1)      # [tb, L]
        onehot = col == lbl
        cnt = cnt_ref[...]                                          # [1, L]
        wgt = jnp.where(onehot, batch_f - cnt, -cnt)                # [tb, L]
        wgt = jnp.where(lbl >= 0, wgt, 0.0)                         # mask pads
        acc_ref[...] += logits * wgt                 # no per-step reduction

        # Collapse to a scalar only once per core-split, on the last step.
        @pl.when(i == pl.num_programs(1) - 1)
        def _():
            partial = jnp.sum(acc_ref[...]) * inv_bsq
            out_ref[...] = jnp.broadcast_to(partial, out_ref.shape)

    cp = dict(dimension_semantics=("parallel", "arbitrary"))
    if vmem_limit_bytes is not None:
        cp["vmem_limit_bytes"] = int(vmem_limit_bytes)

    out = pl.pallas_call(
        kernel,
        out_shape=jax.ShapeDtypeStruct((splits * 8, 128), jnp.float32),
        grid=(splits, inner),
        in_specs=[
            pl.BlockSpec((tb, D), lambda c, i: (c * inner + i, 0)),  # x (f32)
            pl.BlockSpec((tb, 1), lambda c, i: (c * inner + i, 0)),  # labels
            pl.BlockSpec((D, H), lambda c, i: (0, 0)),               # w1
            pl.BlockSpec((1, H), lambda c, i: (0, 0)),               # b1
            pl.BlockSpec((H, L), lambda c, i: (0, 0)),               # w2
            pl.BlockSpec((1, L), lambda c, i: (0, 0)),               # b2
            pl.BlockSpec((1, L), lambda c, i: (0, 0)),               # counts
        ],
        out_specs=pl.BlockSpec((8, 128), lambda c, i: (c, 0)),
        scratch_shapes=[pltpu.VMEM((tb, L), jnp.float32)],
        compiler_params=pltpu.CompilerParams(**cp),
    )(x, labels_2d, w1_c, b1_2d, w2_c, b2_2d, counts)

    # Sum the per-core-split partials (tiny scalar work outside the kernel).
    return jnp.sum(out[0::8, 0])


def _reference_forward(x, labels, w1, b1, w2, b2):
    """Pure-JAX reference matching the PyTorch module exactly (f32, HIGHEST)."""
    hp = lax.Precision.HIGHEST
    h = jnp.maximum(jnp.dot(x, w1, precision=hp) + b1, 0.0)
    logits = jnp.dot(h, w2, precision=hp) + b2
    logp = jax.nn.log_softmax(logits, axis=-1)            # [B, L]
    log_mat = logp[:, labels]                             # [i, j] = logp[i, labels[j]]
    positive = jnp.mean(jnp.diag(log_mat))
    negative = jnp.mean(log_mat)
    return positive - negative


if __name__ == "__main__":
    D, H, L = 32, 32, 16   # input_dim, hidden_size, label_num

    key = jax.random.PRNGKey(0)
    kx, kl, k1, k2, k3, k4 = jax.random.split(key, 6)

    B = 64
    x = jax.random.normal(kx, (B, D), dtype=jnp.float32)
    labels = jax.random.randint(kl, (B,), 0, L, dtype=jnp.int32)

    # nn.Linear(D,H) / nn.Linear(H,L) parameters, pre-transposed to [in, out].
    w1 = jax.random.normal(k1, (D, H), dtype=jnp.float32) * (1.0 / jnp.sqrt(D))
    b1 = jax.random.normal(k2, (H,), dtype=jnp.float32) * 0.01
    w2 = jax.random.normal(k3, (H, L), dtype=jnp.float32) * (1.0 / jnp.sqrt(H))
    b2 = jax.random.normal(k4, (L,), dtype=jnp.float32) * 0.01

    ref = _reference_forward(x, labels, w1, b1, w2, b2)

    # f32 matmul path, multi-step grid (2 core-splits x 2 inner reduction steps).
    out_f32 = club_for_categorical_forward(
        x, labels, w1, b1, w2, b2, L, block_b=16, matmul_dtype=jnp.float32)
    out_f32 = jax.block_until_ready(out_f32)
    assert jnp.allclose(out_f32, ref, atol=1e-3, rtol=1e-3), (out_f32, ref)

    # bf16 MXU path (default), large tile -> single inner step per core-split.
    out_bf16 = club_for_categorical_forward(
        x, labels, w1, b1, w2, b2, L, matmul_dtype=jnp.bfloat16)
    out_bf16 = jax.block_until_ready(out_bf16)
    assert jnp.isfinite(out_bf16)
    assert jnp.allclose(out_bf16, ref, atol=5e-2, rtol=5e-2), (out_bf16, ref)

    # Ragged batch (B % tile != 0) exercises the zero-pad + label==-1 masking.
    Br = 50
    xr, lr = x[:Br], labels[:Br]
    ref_r = _reference_forward(xr, lr, w1, b1, w2, b2)
    out_r = club_for_categorical_forward(
        xr, lr, w1, b1, w2, b2, L, block_b=16, matmul_dtype=jnp.float32)
    out_r = jax.block_until_ready(out_r)
    assert jnp.allclose(out_r, ref_r, atol=1e-3, rtol=1e-3), (out_r, ref_r)

    print("KERNEL_OK")
</pallas_src>

<mosaic_0001>
module attributes {stable_mosaic.version = 11 : i64} {
  func.func @kernel(%arg0: i32, %arg1: i32, %arg2: memref<16x32xf32, #tpu.memory_space<vmem>>, %arg3: memref<16x1xi32, #tpu.memory_space<vmem>>, %arg4: memref<32x32xf32, #tpu.memory_space<vmem>>, %arg5: memref<1x32xf32, #tpu.memory_space<vmem>>, %arg6: memref<32x16xf32, #tpu.memory_space<vmem>>, %arg7: memref<1x16xf32, #tpu.memory_space<vmem>>, %arg8: memref<1x16xf32, #tpu.memory_space<vmem>>, %arg9: memref<8x128xf32, #tpu.memory_space<vmem>>, %arg10: memref<16x16xf32, #tpu.memory_space<vmem>>) attributes {dimension_semantics = [#tpu.dimension_semantics<parallel>, #tpu.dimension_semantics<arbitrary>], iteration_bounds = array<i64: 2, 2>, scalar_prefetch = 0 : i64, scratch_operands = 1 : i64, tpu.core_type = #tpu.core_type<tc>, window_params = [{transform_indices = @transform_0, window_bounds = array<i64: 16, 32>}, {transform_indices = @transform_1, window_bounds = array<i64: 16, 1>}, {pipeline_mode = #tpu.pipeline_mode<synchronous>, transform_indices = @transform_2, window_bounds = array<i64: 32, 32>}, {pipeline_mode = #tpu.pipeline_mode<synchronous>, transform_indices = @transform_3, window_bounds = array<i64: 1, 32>}, {pipeline_mode = #tpu.pipeline_mode<synchronous>, transform_indices = @transform_4, window_bounds = array<i64: 32, 16>}, {pipeline_mode = #tpu.pipeline_mode<synchronous>, transform_indices = @transform_5, window_bounds = array<i64: 1, 16>}, {pipeline_mode = #tpu.pipeline_mode<synchronous>, transform_indices = @transform_6, window_bounds = array<i64: 1, 16>}, {transform_indices = @transform_7, window_bounds = array<i64: 8, 128>}]} {
    %c0_i32 = arith.constant 0 : i32
    %0 = arith.cmpi eq, %arg1, %c0_i32 : i32
    %1 = arith.extui %0 : i1 to i32
    %c0_i32_0 = arith.constant 0 : i32
    %2 = arith.cmpi ne, %1, %c0_i32_0 : i32
    scf.if %2 {
      %cst_25 = arith.constant 0.000000e+00 : f32
      %43 = vector.broadcast %cst_25 : f32 to vector<16x16xf32>
      %c0_26 = arith.constant 0 : index
      %c0_27 = arith.constant 0 : index
      %44 = vector.load %arg10[%c0_26, %c0_27] : memref<16x16xf32, #tpu.memory_space<vmem>>, vector<16x16xf32>
      tpu.vector_store %arg10[%c0_26, %c0_27], %43 {strides = array<i32>} : memref<16x16xf32, #tpu.memory_space<vmem>>, vector<16x16xf32>,
    } else {
    }
    %c0 = arith.constant 0 : index
    %c0_1 = arith.constant 0 : index
    %3 = vector.load %arg2[%c0, %c0_1] : memref<16x32xf32, #tpu.memory_space<vmem>>, vector<16x32xf32>
    %c0_2 = arith.constant 0 : index
    %c0_3 = arith.constant 0 : index
    %4 = vector.load %arg4[%c0_2, %c0_3] : memref<32x32xf32, #tpu.memory_space<vmem>>, vector<32x32xf32>
    %cst = arith.constant dense<0.000000e+00> : vector<16x32xf32>
    %5 = tpu.matmul %3, %4, %cst {dimension_numbers = #tpu.dot_dimension_numbers<[1], [0], [0], [1], [0, 0, 1, 1], [], []>, precision = #tpu.contract_precision<fp32>} : vector<16x32xf32>, vector<32x32xf32>, vector<16x32xf32> -> vector<16x32xf32>
    %c0_4 = arith.constant 0 : index
    %c0_5 = arith.constant 0 : index
    %6 = vector.load %arg5[%c0_4, %c0_5] : memref<1x32xf32, #tpu.memory_space<vmem>>, vector<1x32xf32>
    %7 = vector.broadcast %6 : vector<1x32xf32> to vector<16x32xf32>
    %8 = arith.addf %5, %7 : vector<16x32xf32>
    %cst_6 = arith.constant 0.000000e+00 : f32
    %9 = vector.broadcast %cst_6 : f32 to vector<16x32xf32>
    %10 = arith.maximumf %8, %9 : vector<16x32xf32>
    %c0_7 = arith.constant 0 : index
    %c0_8 = arith.constant 0 : index
    %11 = vector.load %arg6[%c0_7, %c0_8] : memref<32x16xf32, #tpu.memory_space<vmem>>, vector<32x16xf32>
    %cst_9 = arith.constant dense<0.000000e+00> : vector<16x16xf32>
    %12 = tpu.matmul %10, %11, %cst_9 {dimension_numbers = #tpu.dot_dimension_numbers<[1], [0], [0], [1], [0, 0, 1, 1], [], []>, precision = #tpu.contract_precision<fp32>} : vector<16x32xf32>, vector<32x16xf32>, vector<16x16xf32> -> vector<16x16xf32>
    %c0_10 = arith.constant 0 : index
    %c0_11 = arith.constant 0 : index
    %13 = vector.load %arg7[%c0_10, %c0_11] : memref<1x16xf32, #tpu.memory_space<vmem>>, vector<1x16xf32>
    %14 = vector.broadcast %13 : vector<1x16xf32> to vector<16x16xf32>
    %15 = arith.addf %12, %14 : vector<16x16xf32>
    %c0_12 = arith.constant 0 : index
    %c0_13 = arith.constant 0 : index
    %16 = vector.load %arg3[%c0_12, %c0_13] : memref<16x1xi32, #tpu.memory_space<vmem>>, vector<16x1xi32>
    %17 = tpu.iota {dimensions = array<i32: 1>} : vector<16x16xi32>
    %18 = vector.broadcast %16 : vector<16x1xi32> to vector<16x16xi32>
    %19 = arith.cmpi eq, %17, %18 : vector<16x16xi32>
    %c0_14 = arith.constant 0 : index
    %c0_15 = arith.constant 0 : index
    %20 = vector.load %arg8[%c0_14, %c0_15] : memref<1x16xf32, #tpu.memory_space<vmem>>, vector<1x16xf32>
    %cst_16 = arith.constant 6.400000e+01 : f32
    %21 = vector.broadcast %cst_16 : f32 to vector<1x16xf32>
    %22 = arith.subf %21, %20 : vector<1x16xf32>
    %cst_17 = arith.constant 0.000000e+00 : f32
    %23 = vector.broadcast %cst_17 : f32 to vector<1x16xf32>
    %24 = arith.subf %23, %20 : vector<1x16xf32>
    %25 = vector.shape_cast %22 : vector<1x16xf32> to vector<1x16xf32>
    %26 = vector.broadcast %25 : vector<1x16xf32> to vector<16x16xf32>
    %27 = vector.shape_cast %24 : vector<1x16xf32> to vector<1x16xf32>
    %28 = vector.broadcast %27 : vector<1x16xf32> to vector<16x16xf32>
    %29 = arith.select %19, %26, %28 : vector<16x16xi1>, vector<16x16xf32>
    %c0_i32_18 = arith.constant 0 : i32
    %30 = vector.broadcast %c0_i32_18 : i32 to vector<16x1xi32>
    %31 = arith.cmpi sge, %16, %30 : vector<16x1xi32>
    %cst_19 = arith.constant 0.000000e+00 : f32
    %32 = vector.shape_cast %31 : vector<16x1xi1> to vector<16x1xi1>
    %33 = vector.broadcast %32 : vector<16x1xi1> to vector<16x16xi1>
    %34 = vector.broadcast %cst_19 : f32 to vector<16x16xf32>
    %35 = arith.select %33, %29, %34 : vector<16x16xi1>, vector<16x16xf32>
    %c0_20 = arith.constant 0 : index
    %c0_21 = arith.constant 0 : index
    %36 = vector.load %arg10[%c0_20, %c0_21] : memref<16x16xf32, #tpu.memory_space<vmem>>, vector<16x16xf32>
    %37 = arith.mulf %15, %35 : vector<16x16xf32>
    %38 = arith.addf %36, %37 : vector<16x16xf32>
    %c0_22 = arith.constant 0 : index
    %c0_23 = arith.constant 0 : index
    %39 = vector.load %arg10[%c0_22, %c0_23] : memref<16x16xf32, #tpu.memory_space<vmem>>, vector<16x16xf32>
    tpu.vector_store %arg10[%c0_22, %c0_23], %38 {strides = array<i32>} : memref<16x16xf32, #tpu.memory_space<vmem>>, vector<16x16xf32>,
    %c1_i32 = arith.constant 1 : i32
    %40 = arith.cmpi eq, %arg1, %c1_i32 : i32
    %41 = arith.extui %40 : i1 to i32
    %c0_i32_24 = arith.constant 0 : i32
    %42 = arith.cmpi ne, %41, %c0_i32_24 : i32
    scf.if %42 {
      %c0_25 = arith.constant 0 : index
      %c0_26 = arith.constant 0 : index
      %43 = vector.load %arg10[%c0_25, %c0_26] : memref<16x16xf32, #tpu.memory_space<vmem>>, vector<16x16xf32>
      %44 = vector.shape_cast %43 : vector<16x16xf32> to vector<1x16x16xf32>
      %cst_27 = arith.constant dense<0.000000e+00> : vector<1xf32>
      %45 = vector.multi_reduction <add>, %44, %cst_27 [1, 2] : vector<1x16x16xf32> to vector<1xf32>
      %46 = vector.shape_cast %45 : vector<1xf32> to vector<1x1x1xf32>
      %47 = vector.extract %46[0, 0, 0] : f32 from vector<1x1x1xf32>
      %cst_28 = arith.constant 2.44140625E-4 : f32
      %48 = arith.mulf %47, %cst_28 : f32
      %49 = vector.broadcast %48 : f32 to vector<8x128xf32>
      %c0_29 = arith.constant 0 : index
      %c0_30 = arith.constant 0 : index
      %50 = vector.load %arg9[%c0_29, %c0_30] : memref<8x128xf32, #tpu.memory_space<vmem>>, vector<8x128xf32>
      tpu.vector_store %arg9[%c0_29, %c0_30], %49 {strides = array<i32>} : memref<8x128xf32, #tpu.memory_space<vmem>>, vector<8x128xf32>,
    } else {
    }
    return
  }
  func.func @transform_0(%arg0: i32, %arg1: i32) -> (i32, i32) {
    %c2_i32 = arith.constant 2 : i32
    %0 = arith.muli %arg0, %c2_i32 : i32
    %1 = arith.addi %0, %arg1 : i32
    %c0_i32 = arith.constant 0 : i32
    %c0_i32_0 = arith.constant 0 : i32
    return %1, %c0_i32 : i32, i32
  }
  func.func @transform_1(%arg0: i32, %arg1: i32) -> (i32, i32) {
    %c2_i32 = arith.constant 2 : i32
    %0 = arith.muli %arg0, %c2_i32 : i32
    %1 = arith.addi %0, %arg1 : i32
    %c0_i32 = arith.constant 0 : i32
    %c0_i32_0 = arith.constant 0 : i32
    return %1, %c0_i32 : i32, i32
  }
  func.func @transform_2(%arg0: i32, %arg1: i32) -> (i32, i32) {
    %c0_i32 = arith.constant 0 : i32
    %c0_i32_0 = arith.constant 0 : i32
    %c0_i32_1 = arith.constant 0 : i32
    return %c0_i32, %c0_i32_0 : i32, i32
  }
  func.func @transform_3(%arg0: i32, %arg1: i32) -> (i32, i32) {
    %c0_i32 = arith.constant 0 : i32
    %c0_i32_0 = arith.constant 0 : i32
    %c0_i32_1 = arith.constant 0 : i32
    return %c0_i32, %c0_i32_0 : i32, i32
  }
  func.func @transform_4(%arg0: i32, %arg1: i32) -> (i32, i32) {
    %c0_i32 = arith.constant 0 : i32
    %c0_i32_0 = arith.constant 0 : i32
    %c0_i32_1 = arith.constant 0 : i32
    return %c0_i32, %c0_i32_0 : i32, i32
  }
  func.func @transform_5(%arg0: i32, %arg1: i32) -> (i32, i32) {
    %c0_i32 = arith.constant 0 : i32
    %c0_i32_0 = arith.constant 0 : i32
    %c0_i32_1 = arith.constant 0 : i32
    return %c0_i32, %c0_i32_0 : i32, i32
  }
  func.func @transform_6(%arg0: i32, %arg1: i32) -> (i32, i32) {
    %c0_i32 = arith.constant 0 : i32
    %c0_i32_0 = arith.constant 0 : i32
    %c0_i32_1 = arith.constant 0 : i32
    return %c0_i32, %c0_i32_0 : i32, i32
  }
  func.func @transform_7(%arg0: i32, %arg1: i32) -> (i32, i32) {
    %c0_i32 = arith.constant 0 : i32
    %c0_i32_0 = arith.constant 0 : i32
    return %arg0, %c0_i32 : i32, i32
  }
}

</mosaic_0001>

<llo_original>
// kernel: tpu_custom_call.1
$region0: #{tpu_custom_call.1}
  #allocation0 [shape = 'u32[]', space=smem, size = 0x4, offset = 0x4, fixed_abs, tag = 'smem constant byte address 0x4 - core index']
  #allocation1 [shape = 'u32[72,128]{1,0:T(1,128)}', space=vmem, size = 0x9000, scoped, tag = 'internal scratch']
  #allocation2 [shape = 'f32[16,16]{1,0:T(8,128)}', space=vmem, size = 0x2000, scoped, tag = 'scratch operand']
  %s0 = inlined_call_operand.vmem [shape: f32[64,32], index: 0, kind: input, shape index: {}]
  %s1 = inlined_call_operand.vmem [shape: s32[64,1], index: 1, kind: input, shape index: {}]
  %s2 = inlined_call_operand.vmem [shape: f32[32,32], index: 2, kind: input, shape index: {}]
  %s3 = inlined_call_operand.vmem [shape: f32[1,32], index: 3, kind: input, shape index: {}]
  %s4 = inlined_call_operand.vmem [shape: f32[32,16], index: 4, kind: input, shape index: {}]
  %s5 = inlined_call_operand.vmem [shape: f32[1,16], index: 5, kind: input, shape index: {}]
  %s6 = inlined_call_operand.vmem [shape: f32[1,16], index: 6, kind: input, shape index: {}]
  %s7 = inlined_call_operand.hbm [shape: f32[16,128], index: 7, kind: output, shape index: {}]
  %s8 = sld [smem:[#allocation0]]
  $region69: #{tpu_custom_call.1} parent=0
    _
  %s10 = ssub.s32 1, %s8
  %s11 = scalar_select 0, %s10, %s8
  $region1: #{tpu_custom_call.1} parent=0
    #allocation3 [shape = 'u8[8192]{0}', space=vmem, size = 0x2000, scoped, tag = 'output window, operand 0']
    #allocation4 [shape = 's32[2]{0}', space=sflag, size = 0x8, scoped, tag = 'scoped memory for tpu_custom_call.1']
    %12 = vsyncpa [#allocation4], 0
    %s13 = scalar_lea.sflag [#allocation4], 1
    %14 = vsyncpa %s13, 0
    loop: start=0, step=1, limit=6
    $region2: #{tpu_custom_call.1} parent=1 // loop_pre_header
      _
    $region3: #{tpu_custom_call.1} parent=1 // loop_header
      %s16 = sphi 0, %s20
      %p17 = scmp.ge.s32.totalorder %s16, 6
      %s23 = sphi 0, %s35
      %s24 = sphi 0, %s31
      %s25 = sphi 0, %s23
      %s26 = sphi 0, %s24
      %s27 = sphi 0, %s25
      %s28 = sphi 0, %s26
      %s42 = sphi 0, %s44
      %s45 = sphi 0, %s42
      %s46 = sphi 0, %s45
      %s62 = sphi 0, %s46
      %s72 = sphi 0, %s74
      %s75 = sphi 0, %s72
      %s76 = sphi 0, %s75
      %s92 = sphi 0, %s76
      %s96 = sphi 0, %s96
      %s98 = sphi 0, %s96
      %s99 = sphi 0, %s98
      %s113 = sphi 0, %s99
      %s117 = sphi 0, %s117
      %s119 = sphi 0, %s117
      %s120 = sphi 0, %s119
      %s134 = sphi 0, %s120
      %s138 = sphi 0, %s138
      %s140 = sphi 0, %s138
      %s141 = sphi 0, %s140
      %s155 = sphi 0, %s141
      %s159 = sphi 0, %s159
      %s161 = sphi 0, %s159
      %s162 = sphi 0, %s161
      %s176 = sphi 0, %s162
      %s180 = sphi 0, %s180
      %s182 = sphi 0, %s180
      %s183 = sphi 0, %s182
      %s197 = sphi 0, %s183
      %s203 = sphi 0, %s205
      %s206 = sphi 0, %s203
      %s207 = sphi 0, %s206
      %s223 = sphi 0, %s207
    $region4: #{tpu_custom_call.1} parent=1 // loop_header_branch
      %19 = sbr.rel (%p17) target = $region8
    $region5: #{tpu_custom_call.1} parent=1 // loop_body
      %s21 = ssub.s32 %s16, 1
      %s22 = ssub.s32 %s16, 2
      %s29 = sadd.s32 1, %s24
      %p30 = scmp.ge.s32.totalorder %s29, 2
      %s31 = scalar_select %p30, 0, %s29
      %s32 = sadd.s32 1, %s23
      %s33 = scalar_select %p30, %s32, %s23
      %p34 = scmp.ge.s32.totalorder %s33, 2
      %s35 = scalar_select %p34, 0, %s33
      %s36 = smul.u32 %s23, 2
      %s37 = sadd.s32 %s36, %s24
      %s38 = smul.u32 %s35, 2
      %s39 = sadd.s32 %s38, %s31
      %s40 = ssub.s32 %s37, %s39
      %p41 = scmp.eq.s32.totalorder %s40, 0
      %s43 = sadd.s32 %s42, 1
      %s44 = scalar_select %p41, %s42, %s43
      %p47 = pneg %p41
      %p48 = scmp.eq.s32.totalorder %s16, 3
      %p49 = por %p47, %p48
      %p50 = scmp.ne.s32.totalorder %s42, %s45
      %p51 = scmp.eq.s32.totalorder %s16, 0
      %p52 = por %p50, %p51
      %p53 = scmp.ne.s32.totalorder %s42, %s45
      %p54 = scmp.eq.s32.totalorder %s21, 3
      %p55 = por %p53, %p54
      %p56 = scmp.ne.s32.totalorder %s45, %s46
      %p57 = scmp.eq.s32.totalorder %s21, 0
      %p58 = por %p56, %p57
      %p59 = scmp.ne.s32.totalorder %s45, %s46
      %p60 = scmp.eq.s32.totalorder %s22, 3
      %p61 = por %p59, %p60
      %p63 = scmp.ne.s32.totalorder %s46, %s62
      %p64 = scmp.eq.s32.totalorder %s22, 0
      %p65 = por %p63, %p64
      %s66 = smul.u32 %s23, 2
      %s67 = sadd.s32 %s66, %s24
      %s68 = smul.u32 %s35, 2
      %s69 = sadd.s32 %s68, %s31
      %s70 = ssub.s32 %s67, %s69
      %p71 = scmp.eq.s32.totalorder %s70, 0
      %s73 = sadd.s32 %s72, 1
      %s74 = scalar_select %p71, %s72, %s73
      %p77 = pneg %p71
      %p78 = scmp.eq.s32.totalorder %s16, 3
      %p79 = por %p77, %p78
      %p80 = scmp.ne.s32.totalorder %s72, %s75
      %p81 = scmp.eq.s32.totalorder %s16, 0
      %p82 = por %p80, %p81
      %p83 = scmp.ne.s32.totalorder %s72, %s75
      %p84 = scmp.eq.s32.totalorder %s21, 3
      %p85 = por %p83, %p84
      %p86 = scmp.ne.s32.totalorder %s75, %s76
      %p87 = scmp.eq.s32.totalorder %s21, 0
      %p88 = por %p86, %p87
      %p89 = scmp.ne.s32.totalorder %s75, %s76
      %p90 = scmp.eq.s32.totalorder %s22, 3
      %p91 = por %p89, %p90
      %p93 = scmp.ne.s32.totalorder %s76, %s92
      %p94 = scmp.eq.s32.totalorder %s22, 0
      %p95 = por %p93, %p94
      %s97 = sadd.s32 %s96, 1
      %p100 = scmp.eq.s32.totalorder %s16, 3
      %p101 = scmp.ne.s32.totalorder %s96, %s98
      %p102 = scmp.eq.s32.totalorder %s16, 0
      %p103 = por %p101, %p102
      %p104 = scmp.ne.s32.totalorder %s96, %s98
      %p105 = scmp.eq.s32.totalorder %s21, 3
      %p106 = por %p104, %p105
      %p107 = scmp.ne.s32.totalorder %s98, %s99
      %p108 = scmp.eq.s32.totalorder %s21, 0
      %p109 = por %p107, %p108
      %p110 = scmp.ne.s32.totalorder %s98, %s99
      %p111 = scmp.eq.s32.totalorder %s22, 3
      %p112 = por %p110, %p111
      %p114 = scmp.ne.s32.totalorder %s99, %s113
      %p115 = scmp.eq.s32.totalorder %s22, 0
      %p116 = por %p114, %p115
      %s118 = sadd.s32 %s117, 1
      %p121 = scmp.eq.s32.totalorder %s16, 3
      %p122 = scmp.ne.s32.totalorder %s117, %s119
      %p123 = scmp.eq.s32.totalorder %s16, 0
      %p124 = por %p122, %p123
      %p125 = scmp.ne.s32.totalorder %s117, %s119
      %p126 = scmp.eq.s32.totalorder %s21, 3
      %p127 = por %p125, %p126
      %p128 = scmp.ne.s32.totalorder %s119, %s120
      %p129 = scmp.eq.s32.totalorder %s21, 0
      %p130 = por %p128, %p129
      %p131 = scmp.ne.s32.totalorder %s119, %s120
      %p132 = scmp.eq.s32.totalorder %s22, 3
      %p133 = por %p131, %p132
      %p135 = scmp.ne.s32.totalorder %s120, %s134
      %p136 = scmp.eq.s32.totalorder %s22, 0
      %p137 = por %p135, %p136
      %s139 = sadd.s32 %s138, 1
      %p142 = scmp.eq.s32.totalorder %s16, 3
      %p143 = scmp.ne.s32.totalorder %s138, %s140
      %p144 = scmp.eq.s32.totalorder %s16, 0
      %p145 = por %p143, %p144
      %p146 = scmp.ne.s32.totalorder %s138, %s140
      %p147 = scmp.eq.s32.totalorder %s21, 3
      %p148 = por %p146, %p147
      %p149 = scmp.ne.s32.totalorder %s140, %s141
      %p150 = scmp.eq.s32.totalorder %s21, 0
      %p151 = por %p149, %p150
      %p152 = scmp.ne.s32.totalorder %s140, %s141
      %p153 = scmp.eq.s32.totalorder %s22, 3
      %p154 = por %p152, %p153
      %p156 = scmp.ne.s32.totalorder %s141, %s155
      %p157 = scmp.eq.s32.totalorder %s22, 0
      %p158 = por %p156, %p157
      %s160 = sadd.s32 %s159, 1
      %p163 = scmp.eq.s32.totalorder %s16, 3
      %p164 = scmp.ne.s32.totalorder %s159, %s161
      %p165 = scmp.eq.s32.totalorder %s16, 0
      %p166 = por %p164, %p165
      %p167 = scmp.ne.s32.totalorder %s159, %s161
      %p168 = scmp.eq.s32.totalorder %s21, 3
      %p169 = por %p167, %p168
      %p170 = scmp.ne.s32.totalorder %s161, %s162
      %p171 = scmp.eq.s32.totalorder %s21, 0
      %p172 = por %p170, %p171
      %p173 = scmp.ne.s32.totalorder %s161, %s162
      %p174 = scmp.eq.s32.totalorder %s22, 3
      %p175 = por %p173, %p174
      %p177 = scmp.ne.s32.totalorder %s162, %s176
      %p178 = scmp.eq.s32.totalorder %s22, 0
      %p179 = por %p177, %p178
      %s181 = sadd.s32 %s180, 1
      %p184 = scmp.eq.s32.totalorder %s16, 3
      %p185 = scmp.ne.s32.totalorder %s180, %s182
      %p186 = scmp.eq.s32.totalorder %s16, 0
      %p187 = por %p185, %p186
      %p188 = scmp.ne.s32.totalorder %s180, %s182
      %p189 = scmp.eq.s32.totalorder %s21, 3
      %p190 = por %p188, %p189
      %p191 = scmp.ne.s32.totalorder %s182, %s183
      %p192 = scmp.eq.s32.totalorder %s21, 0
      %p193 = por %p191, %p192
      %p194 = scmp.ne.s32.totalorder %s182, %s183
      %p195 = scmp.eq.s32.totalorder %s22, 3
      %p196 = por %p194, %p195
      %p198 = scmp.ne.s32.totalorder %s183, %s197
      %p199 = scmp.eq.s32.totalorder %s22, 0
      %p200 = por %p198, %p199
      %s201 = ssub.s32 %s23, %s35
      %p202 = scmp.eq.s32.totalorder %s201, 0
      %s204 = sadd.s32 %s203, 1
      %s205 = scalar_select %p202, %s203, %s204
      %p208 = pneg %p202
      %p209 = scmp.eq.s32.totalorder %s16, 3
      %p210 = por %p208, %p209
      %p211 = scmp.ne.s32.totalorder %s203, %s206
      %p212 = scmp.eq.s32.totalorder %s16, 0
      %p213 = por %p211, %p212
      %p214 = scmp.ne.s32.totalorder %s203, %s206
      %p215 = scmp.eq.s32.totalorder %s21, 3
      %p216 = por %p214, %p215
      %p217 = scmp.ne.s32.totalorder %s206, %s207
      %p218 = scmp.eq.s32.totalorder %s21, 0
      %p219 = por %p217, %p218
      %p220 = scmp.ne.s32.totalorder %s206, %s207
      %p221 = scmp.eq.s32.totalorder %s22, 3
      %p222 = por %p220, %p221
      %p224 = scmp.ne.s32.totalorder %s207, %s223
      %p225 = scmp.eq.s32.totalorder %s22, 0
      %p226 = por %p224, %p225
      %p227 = scmp.le.s32.totalorder 1, %s16
      %p228 = scmp.lt.s32.totalorder %s16, 5
      %p229 = pnand %p227, %p228
      %p230 = pneg %p229
      // Predicated region
      $region9: #{tpu_custom_call.1} parent=5 // pred_check
        _
      $region10: #{tpu_custom_call.1} parent=5 // pred_check_branch
        %232 = sbr.rel (%p229) target = $region12
      $region11: #{tpu_custom_call.1} parent=5 // pred_region
        %s233 = ssub.s32 %s16, 1
        // Predicated region
        $region13: #{tpu_custom_call.1} parent=11 // pred_check
          %p234 = pneg %p109
        $region14: #{tpu_custom_call.1} parent=11 // pred_check_branch
          %236 = sbr.rel (%p234) target = $region16
        $region15: #{tpu_custom_call.1} parent=11 // pred_region
          _
        $region16: #{tpu_custom_call.1} parent=11 // pred_fallthru
          _
        // Predicated region
        $region17: #{tpu_custom_call.1} parent=11 // pred_check
          %p237 = pneg %p130
        $region18: #{tpu_custom_call.1} parent=11 // pred_check_branch
          %239 = sbr.rel (%p237) target = $region20
        $region19: #{tpu_custom_call.1} parent=11 // pred_region
          _
        $region20: #{tpu_custom_call.1} parent=11 // pred_fallthru
          _
        // Predicated region
        $region21: #{tpu_custom_call.1} parent=11 // pred_check
          %p240 = pneg %p151
        $region22: #{tpu_custom_call.1} parent=11 // pred_check_branch
          %242 = sbr.rel (%p240) target = $region24
        $region23: #{tpu_custom_call.1} parent=11 // pred_region
          _
        $region24: #{tpu_custom_call.1} parent=11 // pred_fallthru
          _
        // Predicated region
        $region25: #{tpu_custom_call.1} parent=11 // pred_check
          %p243 = pneg %p172
        $region26: #{tpu_custom_call.1} parent=11 // pred_check_branch
          %245 = sbr.rel (%p243) target = $region28
        $region27: #{tpu_custom_call.1} parent=11 // pred_region
          _
        $region28: #{tpu_custom_call.1} parent=11 // pred_fallthru
          _
        // Predicated region
        $region29: #{tpu_custom_call.1} parent=11 // pred_check
          %p246 = pneg %p193
        $region30: #{tpu_custom_call.1} parent=11 // pred_check_branch
          %248 = sbr.rel (%p246) target = $region32
        $region31: #{tpu_custom_call.1} parent=11 // pred_region
          _
        $region32: #{tpu_custom_call.1} parent=11 // pred_fallthru
          _
      $region12: #{tpu_custom_call.1} parent=5 // pred_fallthru
        _
      %p249 = scmp.lt.s32.totalorder %s16, 4
      // Predicated region
      $region33: #{tpu_custom_call.1} parent=5 // pred_check
        %p250 = pneg %p249
      $region34: #{tpu_custom_call.1} parent=5 // pred_check_branch
        %252 = sbr.rel (%p250) target = $region36
      $region35: #{tpu_custom_call.1} parent=5 // pred_region
        // Predicated region
        $region37: #{tpu_custom_call.1} parent=35 // pred_check
          %p253 = pneg %p52
        $region38: #{tpu_custom_call.1} parent=35 // pred_check_branch
          %255 = sbr.rel (%p253) target = $region40
        $region39: #{tpu_custom_call.1} parent=35 // pred_region
          %s256 = smul.u32 %s23, 2
          %s257 = sadd.s32 %s256, %s24
          %s258 = smul.u32 2, %s257
          %p259 = scmp.lt.s32.totalorder %s258, 7
          %s260 = scalar_select %p259, %s258, 7
          %s261 = smul.addr %s260, 8
          %s262 = scalar_lea.vmem %s0, %s261
          %s263 = smul.u32 %s23, 2
          %s264 = sadd.s32 %s263, %s24
          %s265 = smul.u32 2, %s264
        $region40: #{tpu_custom_call.1} parent=35 // pred_fallthru
          _
        // Predicated region
        $region41: #{tpu_custom_call.1} parent=35 // pred_check
          %p266 = pneg %p82
        $region42: #{tpu_custom_call.1} parent=35 // pred_check_branch
          %268 = sbr.rel (%p266) target = $region44
        $region43: #{tpu_custom_call.1} parent=35 // pred_region
          %s269 = smul.u32 %s23, 2
          %s270 = sadd.s32 %s269, %s24
          %s271 = smul.u32 2, %s270
          %p272 = scmp.lt.s32.totalorder %s271, 7
          %s273 = scalar_select %p272, %s271, 7
          %s274 = smul.addr %s273, 8
          %s275 = scalar_lea.vmem %s1, %s274
          %s276 = smul.u32 %s23, 2
          %s277 = sadd.s32 %s276, %s24
          %s278 = smul.u32 2, %s277
        $region44: #{tpu_custom_call.1} parent=35 // pred_fallthru
          _
      $region36: #{tpu_custom_call.1} parent=5 // pred_fallthru
        _
      %p279 = scmp.le.s32.totalorder 1, %s16
      %p280 = scmp.lt.s32.totalorder %s16, 5
      %p281 = pnand %p279, %p280
      %p282 = pneg %p281
      // Predicated region
      $region45: #{tpu_custom_call.1} parent=5 // pred_check
        _
      $region46: #{tpu_custom_call.1} parent=5 // pred_check_branch
        %284 = sbr.rel (%p281) target = $region48
      $region47: #{tpu_custom_call.1} parent=5 // pred_region
        %s285 = ssub.s32 %s16, 1
        %s286 = smul.u32 %s25, 2
        %s287 = sadd.s32 %s286, %s26
        %s288 = smul.u32 2, %s287
        %p289 = scmp.lt.s32.totalorder %s288, 7
        %s290 = scalar_select %p289, %s288, 7
        %s291 = smul.addr %s290, 8
        %s292 = scalar_lea.vmem %s0, %s291
        %p293 = pneg %p58
        %p294 = pneg %p55
        %s295 = smul.u32 %s25, 2
        %s296 = sadd.s32 %s295, %s26
        %s297 = smul.u32 2, %s296
        %p298 = scmp.lt.s32.totalorder %s297, 7
        %s299 = scalar_select %p298, %s297, 7
        %s300 = smul.addr %s299, 8
        %s301 = scalar_lea.vmem %s1, %s300
        %p302 = pneg %p88
        %p303 = pneg %p85
        %p304 = pneg %p109
        %p305 = pneg %p106
        %p306 = pneg %p130
        %p307 = pneg %p127
        %p308 = pneg %p151
        %p309 = pneg %p148
        %p310 = pneg %p172
        %p311 = pneg %p169
        %p312 = pneg %p193
        %p313 = pneg %p190
        %p314 = pneg %p219
        %p315 = pneg %p216
        %s316 = sand.u32 %s206, 1
        %s317 = scalar_lea.sflag [#allocation4], %s316
        %s318 = sand.u32 %s206, 1
        %s319 = smul.addr %s318, 8
        %s320 = scalar_lea.vmem [#allocation3], %s319
        %s321 = smul.u32 %s25, 2
        %s322 = sadd.s32 %s321, %s26
        %s323 = smul.u32 2, %s322
        %p324 = scmp.lt.s32.totalorder %s323, 7
        %s325 = scalar_select %p324, %s323, 7
        %s326 = smul.addr %s325, 8
        %s327 = scalar_lea.vmem %s0, %s326
        %s328 = smul.u32 %s25, 2
        %s329 = sadd.s32 %s328, %s26
        %s330 = smul.u32 2, %s329
        %s331 = smul.u32 %s25, 2
        %s332 = sadd.s32 %s331, %s26
        %s333 = smul.u32 2, %s332
        %p334 = scmp.lt.s32.totalorder %s333, 7
        %s335 = scalar_select %p334, %s333, 7
        %s336 = smul.addr %s335, 8
        %s337 = scalar_lea.vmem %s1, %s336
        %s338 = smul.u32 %s25, 2
        %s339 = sadd.s32 %s338, %s26
        %s340 = smul.u32 2, %s339
        %p341 = scmp.eq.s32.totalorder %s26, 0
        // Predicated region
        $region49: #{tpu_custom_call.1} parent=47 // pred_check
          %p342 = pneg %p341
        $region50: #{tpu_custom_call.1} parent=47 // pred_check_branch
          %344 = sbr.rel (%p342) target = $region52
        $region51: #{tpu_custom_call.1} parent=47 // pred_region
          %vm345 = vcmask 130048
          %346 = vst.msk [vmem:[#allocation2] sm:$0xff] %vm345, 0.0
          %347 = vst.msk [vmem:[#allocation2 + $0x8] sm:$0xff] %vm345, 0.0
        $region52: #{tpu_custom_call.1} parent=47 // pred_fallthru
          _
        %v348 = vld [vmem:[%s327] sm:$0xff]
        %v349 = vld [vmem:[%s327 + $0x8] sm:$0xff]
        %v350 = vld [vmem:[%s2] sm:$0xff]
        %v351 = vld [vmem:[%s2 + $0x8] sm:$0xff]
        %v352 = vld [vmem:[%s2 + $0x10] sm:$0xff]
        %v353 = vld [vmem:[%s2 + $0x18] sm:$0xff]
        %v354 = vld [vmem:[%s3] sm:$0x1]
        %v356 = vperm.slane %v354, 0
        %vm358 = vcmask 261120
        %v360 = vsel %vm358, %v348, 0
        %v363 = vsel %vm358, %v349, 0
        %365 = vmatpush.msra.mxu0 0.0
        %366 = vmatpush.msra.mxu0 0.0
        %367 = vmatpush.msra.mxu0 0.0
        %368 = vmatpush.msra.mxu0 0.0
        %369 = vmatpush.msra.mxu0 0.0
        %370 = vmatpush.msra.mxu0 0.0
        %371 = vmatpush.msra.mxu0 0.0
        %372 = vmatpush.msra.mxu0 0.0
        %373 = vmatpush.msra.mxu0 0.0
        %374 = vmatpush.msra.mxu0 0.0
        %375 = vmatpush.msra.mxu0 0.0
        %376 = vmatpush.msra.mxu0 0.0
        %v377 = vand.u32 %v353, 4294901760
        %378 = vmatpush.msra.mxu0 %v377
        %v379 = vand.u32 %v352, 4294901760
        %380 = vmatpush.msra.mxu0 %v379
        %v381 = vand.u32 %v351, 4294901760
        %382 = vmatpush.msra.mxu0 %v381
        %v383 = vand.u32 %v350, 4294901760
        %384 = vmatpush.msra.mxu0 %v383
        %v385 = vand.u32 %v360, 4294901760
        %v386 = vsub.f32 %v360, %v385
        %v387 = vand.u32 %v386, 4294901760
        %v388 = vsub.f32 %v386, %v387
        %v389 = vand.u32 %v388, 4294901760
        %390 = vmatmul.f32.gmra.mxu0 %v389
        %v391 = vpop.f32.mrf.mxu0
        %v392 = vadd.f32 %v356, %v391
        %v393 = vand.u32 %v363, 4294901760
        %v394 = vsub.f32 %v363, %v393
        %v395 = vand.u32 %v394, 4294901760
        %v396 = vsub.f32 %v394, %v395
        %v397 = vand.u32 %v396, 4294901760
        %398 = vmatmul.f32.gmra.mxu0 %v397
        %v399 = vpop.f32.mrf.mxu0
        %v400 = vadd.f32 %v356, %v399
        %401 = vdwg.mxu0
        %402 = vmatpush.msra.mxu0 0.0
        %403 = vmatpush.msra.mxu0 0.0
        %404 = vmatpush.msra.mxu0 0.0
        %405 = vmatpush.msra.mxu0 0.0
        %406 = vmatpush.msra.mxu0 0.0
        %407 = vmatpush.msra.mxu0 0.0
        %408 = vmatpush.msra.mxu0 0.0
        %409 = vmatpush.msra.mxu0 0.0
        %410 = vmatpush.msra.mxu0 0.0
        %411 = vmatpush.msra.mxu0 0.0
        %412 = vmatpush.msra.mxu0 0.0
        %413 = vmatpush.msra.mxu0 0.0
        %v414 = vand.u32 %v353, 4294901760
        %v415 = vsub.f32 %v353, %v414
        %v416 = vand.u32 %v415, 4294901760
        %v417 = vsub.f32 %v415, %v416
        %v418 = vand.u32 %v417, 4294901760
        %419 = vmatpush.msra.mxu0 %v418
        %v420 = vand.u32 %v352, 4294901760
        %v421 = vsub.f32 %v352, %v420
        %v422 = vand.u32 %v421, 4294901760
        %v423 = vsub.f32 %v421, %v422
        %v424 = vand.u32 %v423, 4294901760
        %425 = vmatpush.msra.mxu0 %v424
        %v426 = vand.u32 %v351, 4294901760
        %v427 = vsub.f32 %v351, %v426
        %v428 = vand.u32 %v427, 4294901760
        %v429 = vsub.f32 %v427, %v428
        %v430 = vand.u32 %v429, 4294901760
        %431 = vmatpush.msra.mxu0 %v430
        %v432 = vand.u32 %v350, 4294901760
        %v433 = vsub.f32 %v350, %v432
        %v434 = vand.u32 %v433, 4294901760
        %v435 = vsub.f32 %v433, %v434
        %v436 = vand.u32 %v435, 4294901760
        %437 = vmatpush.msra.mxu0 %v436
        %v438 = vand.u32 %v360, 4294901760
        %439 = vmatmul.f32.gmra.mxu0 %v438
        %v440 = vpop.f32.mrf.mxu0
        %v441 = vadd.f32 %v392, %v440
        %v442 = vand.u32 %v363, 4294901760
        %443 = vmatmul.f32.gmra.mxu0 %v442
        %v444 = vpop.f32.mrf.mxu0
        %v445 = vadd.f32 %v400, %v444
        %446 = vdwg.mxu0
        %447 = vmatpush.msra.mxu0 0.0
        %448 = vmatpush.msra.mxu0 0.0
        %449 = vmatpush.msra.mxu0 0.0
        %450 = vmatpush.msra.mxu0 0.0
        %451 = vmatpush.msra.mxu0 0.0
        %452 = vmatpush.msra.mxu0 0.0
        %453 = vmatpush.msra.mxu0 0.0
        %454 = vmatpush.msra.mxu0 0.0
        %455 = vmatpush.msra.mxu0 0.0
        %456 = vmatpush.msra.mxu0 0.0
        %457 = vmatpush.msra.mxu0 0.0
        %458 = vmatpush.msra.mxu0 0.0
        %v459 = vand.u32 %v353, 4294901760
        %v460 = vsub.f32 %v353, %v459
        %461 = vmatpush.msra.mxu0 %v460
        %v462 = vand.u32 %v352, 4294901760
        %v463 = vsub.f32 %v352, %v462
        %464 = vmatpush.msra.mxu0 %v463
        %v465 = vand.u32 %v351, 4294901760
        %v466 = vsub.f32 %v351, %v465
        %467 = vmatpush.msra.mxu0 %v466
        %v468 = vand.u32 %v350, 4294901760
        %v469 = vsub.f32 %v350, %v468
        %470 = vmatpush.msra.mxu0 %v469
        %v471 = vand.u32 %v360, 4294901760
        %v472 = vsub.f32 %v360, %v471
        %473 = vmatmul.f32.gmra.mxu0 %v472
        %v474 = vpop.f32.mrf.mxu0
        %v475 = vadd.f32 %v441, %v474
        %v476 = vand.u32 %v363, 4294901760
        %v477 = vsub.f32 %v363, %v476
        %478 = vmatmul.f32.gmra.mxu0 %v477
        %v479 = vpop.f32.mrf.mxu0
        %v480 = vadd.f32 %v445, %v479
        %481 = vdwg.mxu0
        %482 = vmatpush.msra.mxu0 0.0
        %483 = vmatpush.msra.mxu0 0.0
        %484 = vmatpush.msra.mxu0 0.0
        %485 = vmatpush.msra.mxu0 0.0
        %486 = vmatpush.msra.mxu0 0.0
        %487 = vmatpush.msra.mxu0 0.0
        %488 = vmatpush.msra.mxu0 0.0
        %489 = vmatpush.msra.mxu0 0.0
        %490 = vmatpush.msra.mxu0 0.0
        %491 = vmatpush.msra.mxu0 0.0
        %492 = vmatpush.msra.mxu0 0.0
        %493 = vmatpush.msra.mxu0 0.0
        %v494 = vand.u32 %v353, 4294901760
        %495 = vmatpush.msra.mxu0 %v494
        %v496 = vand.u32 %v352, 4294901760
        %497 = vmatpush.msra.mxu0 %v496
        %v498 = vand.u32 %v351, 4294901760
        %499 = vmatpush.msra.mxu0 %v498
        %v500 = vand.u32 %v350, 4294901760
        %501 = vmatpush.msra.mxu0 %v500
        %v502 = vand.u32 %v360, 4294901760
        %v503 = vsub.f32 %v360, %v502
        %v504 = vand.u32 %v503, 4294901760
        %505 = vmatmul.f32.gmra.mxu0 %v504
        %v506 = vpop.f32.mrf.mxu0
        %v507 = vadd.f32 %v475, %v506
        %v508 = vand.u32 %v363, 4294901760
        %v509 = vsub.f32 %v363, %v508
        %v510 = vand.u32 %v509, 4294901760
        %511 = vmatmul.f32.gmra.mxu0 %v510
        %v512 = vpop.f32.mrf.mxu0
        %v513 = vadd.f32 %v480, %v512
        %514 = vdwg.mxu0
        %515 = vmatpush.msra.mxu0 0.0
        %516 = vmatpush.msra.mxu0 0.0
        %517 = vmatpush.msra.mxu0 0.0
        %518 = vmatpush.msra.mxu0 0.0
        %519 = vmatpush.msra.mxu0 0.0
        %520 = vmatpush.msra.mxu0 0.0
        %521 = vmatpush.msra.mxu0 0.0
        %522 = vmatpush.msra.mxu0 0.0
        %523 = vmatpush.msra.mxu0 0.0
        %524 = vmatpush.msra.mxu0 0.0
        %525 = vmatpush.msra.mxu0 0.0
        %526 = vmatpush.msra.mxu0 0.0
        %v527 = vand.u32 %v353, 4294901760
        %v528 = vsub.f32 %v353, %v527
        %v529 = vand.u32 %v528, 4294901760
        %530 = vmatpush.msra.mxu0 %v529
        %v531 = vand.u32 %v352, 4294901760
        %v532 = vsub.f32 %v352, %v531
        %v533 = vand.u32 %v532, 4294901760
        %534 = vmatpush.msra.mxu0 %v533
        %v535 = vand.u32 %v351, 4294901760
        %v536 = vsub.f32 %v351, %v535
        %v537 = vand.u32 %v536, 4294901760
        %538 = vmatpush.msra.mxu0 %v537
        %v539 = vand.u32 %v350, 4294901760
        %v540 = vsub.f32 %v350, %v539
        %v541 = vand.u32 %v540, 4294901760
        %542 = vmatpush.msra.mxu0 %v541
        %v543 = vand.u32 %v360, 4294901760
        %544 = vmatmul.f32.gmra.mxu0 %v543
        %v545 = vpop.f32.mrf.mxu0
        %v546 = vadd.f32 %v507, %v545
        %v547 = vand.u32 %v363, 4294901760
        %548 = vmatmul.f32.gmra.mxu0 %v547
        %v549 = vpop.f32.mrf.mxu0
        %v550 = vadd.f32 %v513, %v549
        %551 = vdwg.mxu0
        %552 = vmatpush.msra.mxu0 0.0
        %553 = vmatpush.msra.mxu0 0.0
        %554 = vmatpush.msra.mxu0 0.0
        %555 = vmatpush.msra.mxu0 0.0
        %556 = vmatpush.msra.mxu0 0.0
        %557 = vmatpush.msra.mxu0 0.0
        %558 = vmatpush.msra.mxu0 0.0
        %559 = vmatpush.msra.mxu0 0.0
        %560 = vmatpush.msra.mxu0 0.0
        %561 = vmatpush.msra.mxu0 0.0
        %562 = vmatpush.msra.mxu0 0.0
        %563 = vmatpush.msra.mxu0 0.0
        %v564 = vand.u32 %v353, 4294901760
        %565 = vmatpush.msra.mxu0 %v564
        %v566 = vand.u32 %v352, 4294901760
        %567 = vmatpush.msra.mxu0 %v566
        %v568 = vand.u32 %v351, 4294901760
        %569 = vmatpush.msra.mxu0 %v568
        %v570 = vand.u32 %v350, 4294901760
        %571 = vmatpush.msra.mxu0 %v570
        %v572 = vand.u32 %v360, 4294901760
        %573 = vmatmul.f32.gmra.mxu0 %v572
        %v574 = vpop.f32.mrf.mxu0
        %v575 = vadd.f32 %v546, %v574
        %v576 = vand.u32 %v363, 4294901760
        %577 = vmatmul.f32.gmra.mxu0 %v576
        %v578 = vpop.f32.mrf.mxu0
        %v579 = vadd.f32 %v550, %v578
        %580 = vdwg.mxu0
        %v581 = vmax.f32 %v575, 0.0
        %v582 = vmax.f32 %v579, 0.0
        %v583 = vld [vmem:[%s4] sm:$0xff]
        %v584 = vld [vmem:[%s4 + $0x8] sm:$0xff]
        %v585 = vld [vmem:[%s4 + $0x10] sm:$0xff]
        %v586 = vld [vmem:[%s4 + $0x18] sm:$0xff]
        %v587 = vld [vmem:[%s5] sm:$0x1]
        %v589 = vperm.slane %v587, 0
        %v592 = vsel %vm358, %v581, 0
        %v595 = vsel %vm358, %v582, 0
        %597 = vmatpush.msra.mxu0 0.0
        %598 = vmatpush.msra.mxu0 0.0
        %599 = vmatpush.msra.mxu0 0.0
        %600 = vmatpush.msra.mxu0 0.0
        %601 = vmatpush.msra.mxu0 0.0
        %602 = vmatpush.msra.mxu0 0.0
        %603 = vmatpush.msra.mxu0 0.0
        %604 = vmatpush.msra.mxu0 0.0
        %605 = vmatpush.msra.mxu0 0.0
        %606 = vmatpush.msra.mxu0 0.0
        %607 = vmatpush.msra.mxu0 0.0
        %608 = vmatpush.msra.mxu0 0.0
        %v609 = vand.u32 %v586, 4294901760
        %610 = vmatpush.msra.mxu0 %v609
        %v611 = vand.u32 %v585, 4294901760
        %612 = vmatpush.msra.mxu0 %v611
        %v613 = vand.u32 %v584, 4294901760
        %614 = vmatpush.msra.mxu0 %v613
        %v615 = vand.u32 %v583, 4294901760
        %616 = vmatpush.msra.mxu0 %v615
        %v617 = vand.u32 %v592, 4294901760
        %v618 = vsub.f32 %v592, %v617
        %v619 = vand.u32 %v618, 4294901760
        %v620 = vsub.f32 %v618, %v619
        %v621 = vand.u32 %v620, 4294901760
        %622 = vmatmul.f32.gmra.mxu0 %v621
        %v623 = vpop.f32.mrf.mxu0
        %v624 = vadd.f32 %v589, %v623
        %v625 = vand.u32 %v595, 4294901760
        %v626 = vsub.f32 %v595, %v625
        %v627 = vand.u32 %v626, 4294901760
        %v628 = vsub.f32 %v626, %v627
        %v629 = vand.u32 %v628, 4294901760
        %630 = vmatmul.f32.gmra.mxu0 %v629
        %v631 = vpop.f32.mrf.mxu0
        %v632 = vadd.f32 %v589, %v631
        %633 = vdwg.mxu0
        %634 = vmatpush.msra.mxu0 0.0
        %635 = vmatpush.msra.mxu0 0.0
        %636 = vmatpush.msra.mxu0 0.0
        %637 = vmatpush.msra.mxu0 0.0
        %638 = vmatpush.msra.mxu0 0.0
        %639 = vmatpush.msra.mxu0 0.0
        %640 = vmatpush.msra.mxu0 0.0
        %641 = vmatpush.msra.mxu0 0.0
        %642 = vmatpush.msra.mxu0 0.0
        %643 = vmatpush.msra.mxu0 0.0
        %644 = vmatpush.msra.mxu0 0.0
        %645 = vmatpush.msra.mxu0 0.0
        %v646 = vand.u32 %v586, 4294901760
        %v647 = vsub.f32 %v586, %v646
        %v648 = vand.u32 %v647, 4294901760
        %v649 = vsub.f32 %v647, %v648
        %v650 = vand.u32 %v649, 4294901760
        %651 = vmatpush.msra.mxu0 %v650
        %v652 = vand.u32 %v585, 4294901760
        %v653 = vsub.f32 %v585, %v652
        %v654 = vand.u32 %v653, 4294901760
        %v655 = vsub.f32 %v653, %v654
        %v656 = vand.u32 %v655, 4294901760
        %657 = vmatpush.msra.mxu0 %v656
        %v658 = vand.u32 %v584, 4294901760
        %v659 = vsub.f32 %v584, %v658
        %v660 = vand.u32 %v659, 4294901760
        %v661 = vsub.f32 %v659, %v660
        %v662 = vand.u32 %v661, 4294901760
        %663 = vmatpush.msra.mxu0 %v662
        %v664 = vand.u32 %v583, 4294901760
        %v665 = vsub.f32 %v583, %v664
        %v666 = vand.u32 %v665, 4294901760
        %v667 = vsub.f32 %v665, %v666
        %v668 = vand.u32 %v667, 4294901760
        %669 = vmatpush.msra.mxu0 %v668
        %v670 = vand.u32 %v592, 4294901760
        %671 = vmatmul.f32.gmra.mxu0 %v670
        %v672 = vpop.f32.mrf.mxu0
        %v673 = vadd.f32 %v624, %v672
        %v674 = vand.u32 %v595, 4294901760
        %675 = vmatmul.f32.gmra.mxu0 %v674
        %v676 = vpop.f32.mrf.mxu0
        %v677 = vadd.f32 %v632, %v676
        %678 = vdwg.mxu0
        %679 = vmatpush.msra.mxu0 0.0
        %680 = vmatpush.msra.mxu0 0.0
        %681 = vmatpush.msra.mxu0 0.0
        %682 = vmatpush.msra.mxu0 0.0
        %683 = vmatpush.msra.mxu0 0.0
        %684 = vmatpush.msra.mxu0 0.0
        %685 = vmatpush.msra.mxu0 0.0
        %686 = vmatpush.msra.mxu0 0.0
        %687 = vmatpush.msra.mxu0 0.0
        %688 = vmatpush.msra.mxu0 0.0
        %689 = vmatpush.msra.mxu0 0.0
        %690 = vmatpush.msra.mxu0 0.0
        %v691 = vand.u32 %v586, 4294901760
        %v692 = vsub.f32 %v586, %v691
        %693 = vmatpush.msra.mxu0 %v692
        %v694 = vand.u32 %v585, 4294901760
        %v695 = vsub.f32 %v585, %v694
        %696 = vmatpush.msra.mxu0 %v695
        %v697 = vand.u32 %v584, 4294901760
        %v698 = vsub.f32 %v584, %v697
        %699 = vmatpush.msra.mxu0 %v698
        %v700 = vand.u32 %v583, 4294901760
        %v701 = vsub.f32 %v583, %v700
        %702 = vmatpush.msra.mxu0 %v701
        %v703 = vand.u32 %v592, 4294901760
        %v704 = vsub.f32 %v592, %v703
        %705 = vmatmul.f32.gmra.mxu0 %v704
        %v706 = vpop.f32.mrf.mxu0
        %v707 = vadd.f32 %v673, %v706
        %v708 = vand.u32 %v595, 4294901760
        %v709 = vsub.f32 %v595, %v708
        %710 = vmatmul.f32.gmra.mxu0 %v709
        %v711 = vpop.f32.mrf.mxu0
        %v712 = vadd.f32 %v677, %v711
        %713 = vdwg.mxu0
        %714 = vmatpush.msra.mxu0 0.0
        %715 = vmatpush.msra.mxu0 0.0
        %716 = vmatpush.msra.mxu0 0.0
        %717 = vmatpush.msra.mxu0 0.0
        %718 = vmatpush.msra.mxu0 0.0
        %719 = vmatpush.msra.mxu0 0.0
        %720 = vmatpush.msra.mxu0 0.0
        %721 = vmatpush.msra.mxu0 0.0
        %722 = vmatpush.msra.mxu0 0.0
        %723 = vmatpush.msra.mxu0 0.0
        %724 = vmatpush.msra.mxu0 0.0
        %725 = vmatpush.msra.mxu0 0.0
        %v726 = vand.u32 %v586, 4294901760
        %727 = vmatpush.msra.mxu0 %v726
        %v728 = vand.u32 %v585, 4294901760
        %729 = vmatpush.msra.mxu0 %v728
        %v730 = vand.u32 %v584, 4294901760
        %731 = vmatpush.msra.mxu0 %v730
        %v732 = vand.u32 %v583, 4294901760
        %733 = vmatpush.msra.mxu0 %v732
        %v734 = vand.u32 %v592, 4294901760
        %v735 = vsub.f32 %v592, %v734
        %v736 = vand.u32 %v735, 4294901760
        %737 = vmatmul.f32.gmra.mxu0 %v736
        %v738 = vpop.f32.mrf.mxu0
        %v739 = vadd.f32 %v707, %v738
        %v740 = vand.u32 %v595, 4294901760
        %v741 = vsub.f32 %v595, %v740
        %v742 = vand.u32 %v741, 4294901760
        %743 = vmatmul.f32.gmra.mxu0 %v742
        %v744 = vpop.f32.mrf.mxu0
        %v745 = vadd.f32 %v712, %v744
        %746 = vdwg.mxu0
        %747 = vmatpush.msra.mxu0 0.0
        %748 = vmatpush.msra.mxu0 0.0
        %749 = vmatpush.msra.mxu0 0.0
        %750 = vmatpush.msra.mxu0 0.0
        %751 = vmatpush.msra.mxu0 0.0
        %752 = vmatpush.msra.mxu0 0.0
        %753 = vmatpush.msra.mxu0 0.0
        %754 = vmatpush.msra.mxu0 0.0
        %755 = vmatpush.msra.mxu0 0.0
        %756 = vmatpush.msra.mxu0 0.0
        %757 = vmatpush.msra.mxu0 0.0
        %758 = vmatpush.msra.mxu0 0.0
        %v759 = vand.u32 %v586, 4294901760
        %v760 = vsub.f32 %v586, %v759
        %v761 = vand.u32 %v760, 4294901760
        %762 = vmatpush.msra.mxu0 %v761
        %v763 = vand.u32 %v585, 4294901760
        %v764 = vsub.f32 %v585, %v763
        %v765 = vand.u32 %v764, 4294901760
        %766 = vmatpush.msra.mxu0 %v765
        %v767 = vand.u32 %v584, 4294901760
        %v768 = vsub.f32 %v584, %v767
        %v769 = vand.u32 %v768, 4294901760
        %770 = vmatpush.msra.mxu0 %v769
        %v771 = vand.u32 %v583, 4294901760
        %v772 = vsub.f32 %v583, %v771
        %v773 = vand.u32 %v772, 4294901760
        %774 = vmatpush.msra.mxu0 %v773
        %v775 = vand.u32 %v592, 4294901760
        %776 = vmatmul.f32.gmra.mxu0 %v775
        %v777 = vpop.f32.mrf.mxu0
        %v778 = vadd.f32 %v739, %v777
        %v779 = vand.u32 %v595, 4294901760
        %780 = vmatmul.f32.gmra.mxu0 %v779
        %v781 = vpop.f32.mrf.mxu0
        %v782 = vadd.f32 %v745, %v781
        %783 = vdwg.mxu0
        %784 = vmatpush.msra.mxu0 0.0
        %785 = vmatpush.msra.mxu0 0.0
        %786 = vmatpush.msra.mxu0 0.0
        %787 = vmatpush.msra.mxu0 0.0
        %788 = vmatpush.msra.mxu0 0.0
        %789 = vmatpush.msra.mxu0 0.0
        %790 = vmatpush.msra.mxu0 0.0
        %791 = vmatpush.msra.mxu0 0.0
        %792 = vmatpush.msra.mxu0 0.0
        %793 = vmatpush.msra.mxu0 0.0
        %794 = vmatpush.msra.mxu0 0.0
        %795 = vmatpush.msra.mxu0 0.0
        %v796 = vand.u32 %v586, 4294901760
        %797 = vmatpush.msra.mxu0 %v796
        %v798 = vand.u32 %v585, 4294901760
        %799 = vmatpush.msra.mxu0 %v798
        %v800 = vand.u32 %v584, 4294901760
        %801 = vmatpush.msra.mxu0 %v800
        %v802 = vand.u32 %v583, 4294901760
        %803 = vmatpush.msra.mxu0 %v802
        %v804 = vand.u32 %v592, 4294901760
        %805 = vmatmul.f32.gmra.mxu0 %v804
        %v806 = vpop.f32.mrf.mxu0
        %v807 = vadd.f32 %v778, %v806
        %v808 = vand.u32 %v595, 4294901760
        %809 = vmatmul.f32.gmra.mxu0 %v808
        %v810 = vpop.f32.mrf.mxu0
        %v811 = vadd.f32 %v782, %v810
        %812 = vdwg.mxu0
        %v813 = vld [vmem:[%s337] sm:$0xff]
        %v814 = vld [vmem:[%s337 + $0x8] sm:$0xff]
        %v815 = vlaneseq
        %v816 = vand.u32 %v815, 127
        %817 = vset.pattern.permute.xlu0 0
        %818 = vperm.xlu0 %817, %v813
        %v819 = vpop.permute.xlu0 %818
        %820 = vset.pattern.permute.xlu0 0
        %821 = vperm.xlu0 %820, %v814
        %v822 = vpop.permute.xlu0 %821
        %vm823 = vcmp.eq.s32.totalorder %v816, %v819
        %vm824 = vcmp.eq.s32.totalorder %v816, %v822
        %v825 = vld [vmem:[%s6] sm:$0x1]
        %v826 = vsub.f32 64.0, %v825
        %v827 = vsub.f32 0.0, %v825
        %v829 = vperm.slane %v826, 0
        %v832 = vperm.slane %v827, 0
        %v834 = vsel %vm823, %v829, %v832
        %v835 = vsel %vm824, %v829, %v832
        %vm836 = vcmp.ge.s32.totalorder %v813, 0
        %vm837 = vcmp.ge.s32.totalorder %v814, 0
        %v838 = vsel %vm836, 1, 0
        %v839 = vsel %vm837, 1, 0
        %840 = vset.pattern.permute.xlu0 0
        %841 = vperm.xlu0 %840, %v838
        %v842 = vpop.permute.xlu0 %841
        %843 = vset.pattern.permute.xlu0 0
        %844 = vperm.xlu0 %843, %v839
        %v845 = vpop.permute.xlu0 %844
        %vm846 = vcmp.eq.s32.totalorder %v842, 1
        %vm847 = vcmp.eq.s32.totalorder %v845, 1
        %v848 = vsel %vm846, %v834, 0.0
        %v849 = vsel %vm847, %v835, 0.0
        %v850 = vld [vmem:[#allocation2] sm:$0xff]
        %v851 = vld [vmem:[#allocation2 + $0x8] sm:$0xff]
        %v852 = vmul.f32 %v807, %v848
        %v853 = vmul.f32 %v811, %v849
        %v854 = vadd.f32 %v850, %v852
        %v855 = vadd.f32 %v851, %v853
        %vm856 = vcmask 130048
        %857 = vst.msk [vmem:[#allocation2] sm:$0xff] %vm856, %v854
        %858 = vst.msk [vmem:[#allocation2 + $0x8] sm:$0xff] %vm856, %v855
        %p859 = scmp.eq.s32.totalorder %s26, 1
        // Predicated region
        $region53: #{tpu_custom_call.1} parent=47 // pred_check
          %p860 = pneg %p859
        $region54: #{tpu_custom_call.1} parent=47 // pred_check_branch
          %862 = sbr.rel (%p860) target = $region56
        $region55: #{tpu_custom_call.1} parent=47 // pred_region
          %v863 = vld [vmem:[#allocation2] sm:$0xff]
          %v864 = vld [vmem:[#allocation2 + $0x8] sm:$0xff]
          %v865 = vsel %vm856, %v863, 0.0
          %v866 = vsel %vm856, %v864, 0.0
          %v867 = vadd.f32 %v865, %v866
          %868 = vadd.xlane.f32.xlu0 %v867
          %v869 = vpop.xlane.xlu0 %868
          %v870 = vrot.slane %v869, 4
          %v871 = vadd.f32 %v869, %v870
          %v872 = vrot.slane %v871, 2
          %v873 = vadd.f32 %v871, %v872
          %v874 = vrot.slane %v873, 1
          %v875 = vadd.f32 %v873, %v874
          %s876 = vtos %v875
          %s877 = smul.f32 %s876, 0.00024414063
          %v878 = vstv %s877
          %879 = vst [vmem:[%s320] sm:$0xff] %v878
        $region56: #{tpu_custom_call.1} parent=47 // pred_fallthru
          _
        %s880 = sand.u32 %s206, 1
        %s881 = scalar_lea.sflag [#allocation4], %s880
        %s882 = sand.u32 %s206, 1
        %s883 = smul.addr %s882, 8
        %s884 = scalar_lea.vmem [#allocation3], %s883
        // Predicated region
        $region57: #{tpu_custom_call.1} parent=47 // pred_check
          %p885 = pneg %p216
        $region58: #{tpu_custom_call.1} parent=47 // pred_check_branch
          %887 = sbr.rel (%p885) target = $region60
        $region59: #{tpu_custom_call.1} parent=47 // pred_region
          %889 = vsyncadd %s881, 0
          %s890 = smul.addr %s25, 8
          %s891 = scalar_lea.hbm %s7, %s890
          %s893 = sshll.u32 %s884, 4
          %s894 = int_to_ptr.vmem [resolvable:$true] %s893
          %s895 = sshll.u32 %s891, 4
          %s896 = int_to_ptr.hbm [resolvable:$true] %s895
          %898 = dma.vmem_to_hbm [thread:$0]  %s894, 128, %s896, %s881
        $region60: #{tpu_custom_call.1} parent=47 // pred_fallthru
          _
      $region48: #{tpu_custom_call.1} parent=5 // pred_fallthru
        _
      %p899 = scmp.le.s32.totalorder 2, %s16
      // Predicated region
      $region61: #{tpu_custom_call.1} parent=5 // pred_check
        %p900 = pneg %p899
      $region62: #{tpu_custom_call.1} parent=5 // pred_check_branch
        %902 = sbr.rel (%p900) target = $region64
      $region63: #{tpu_custom_call.1} parent=5 // pred_region
        %s903 = ssub.s32 %s16, 2
        // Predicated region
        $region65: #{tpu_custom_call.1} parent=63 // pred_check
          %p904 = pneg %p222
        $region66: #{tpu_custom_call.1} parent=63 // pred_check_branch
          %906 = sbr.rel (%p904) target = $region68
        $region67: #{tpu_custom_call.1} parent=63 // pred_region
          %s907 = sand.u32 %s207, 1
          %s908 = scalar_lea.sflag [#allocation4], %s907
          %s909 = sand.u32 %s207, 1
          %s910 = smul.addr %s909, 8
          %s911 = scalar_lea.vmem [#allocation3], %s910
          %913 = dma.done %s908, 128
        $region68: #{tpu_custom_call.1} parent=63 // pred_fallthru
          _
      $region64: #{tpu_custom_call.1} parent=5 // pred_fallthru
        _
    $region6: #{tpu_custom_call.1} parent=1 // loop_footer
      %s20 = sadd.s32 1, %s16
    $region7: #{tpu_custom_call.1} parent=1 // loop_footer_branch
      %15 = sbr.rel target = $region3
    $region8: #{tpu_custom_call.1} parent=1 // loop_exit
      _
    %914 = vsyncpa [#allocation4], 1
    %s915 = scalar_lea.sflag [#allocation4], 1
    %916 = vsyncpa %s915, 1

</llo_original>
